<compile_context>
chip_gen: v5e
topology: v5e:2x2
jax: 0.10.0
libtpu: 0.0.40
codegen_flags: <defaults>
</compile_context>

<pallas_src>
import collections

import jax
import jax.numpy as jnp
from jax.experimental import pallas as pl
from jax.experimental.pallas import tpu as pltpu

MaskMeta = collections.namedtuple(
    "MaskMeta", ["hard", "flops_per_position", "total_positions"])


def _spatial_loss_kernel(tile_off_ref, n_tiles_ref, fpp_dil_ref, fpp_std_ref,
                         masks_ref, c_ref, acc_ref):
    l = pl.program_id(0)
    k = pl.program_id(1)

    @pl.when(k == 0)
    def _():
        acc_ref[...] = jnp.zeros_like(acc_ref)

    # Skip steps past this layer's last tile (their DMA is also skipped because
    # the index_map clamps to a repeated block index).
    @pl.when(k < n_tiles_ref[l])
    def _():
        d = masks_ref[0].astype(jnp.float32)        # (b_pad, tile_n)
        s = masks_ref[1].astype(jnp.float32)
        acc_ref[...] += (fpp_dil_ref[l] * jnp.sum(d, axis=-1, keepdims=True)
                         + fpp_std_ref[l] * jnp.sum(s, axis=-1, keepdims=True))

    @pl.when(k == pl.num_programs(1) - 1)
    def _():
        c_ref[0] = acc_ref[...]                     # (b_pad, 1)


def _round_up(x, m):
    return (x + m - 1) // m * m


def spatial_loss(masks, sparsity_target, sample_weight=None,
                 unlimited_lower=False, layer_loss_method='flops',
                 tile_n=None):
    """JAX/Pallas equivalent of SpatialLoss.forward (layer_loss_method='flops').

    `masks` is a list of dicts {'dilate': MaskMeta, 'std': MaskMeta or None};
    MaskMeta.hard is (B, C, H, W) of 0/1 values (any dtype).  Returns
    (loss_mask scalar, mask_percents (L_active,) array).
    """
    if layer_loss_method != 'flops':
        # TODO(synk): 'later_mask' / 'front_mask' ratio variants not ported.
        raise NotImplementedError(layer_loss_method)

    num_masks = len(masks)
    active = [m for m in masks if m['std'] is not None]
    if not active:
        return jnp.zeros((), jnp.float32), jnp.zeros((0,), jnp.float32)

    B = int(active[0]['std'].hard.shape[0])
    L = len(active)

    if sample_weight is None:
        sample_weight = jnp.ones((B,), jnp.float32)
    else:
        sample_weight = jnp.asarray(sample_weight, jnp.float32)

    # Static layer budgets (LayerCurriculum with layer_strategy='static').
    budgets = jnp.full((L,), float(sparsity_target), jnp.float32)

    # ---- pack masks: (2 streams, B_pad sublanes, N_total lanes) int8 --------
    b_pad = _round_up(B, 32)                        # int8 sublane tile
    n_sizes = [max(int(m['dilate'].hard[0].size), int(m['std'].hard[0].size))
               for m in active]
    n_max = max(n_sizes)
    if tile_n is None:
        tile_n = max(512, (1 << 20) // (2 * b_pad))  # ~1 MiB per grid step
    tile_n = min(_round_up(int(tile_n), 128), _round_up(n_max, 128))

    # TODO(synk): in a real training step the mask producers should emit this
    # packed int8 slab directly (fused into the producer) instead of the
    # cast/pad/concat relayout below.
    def _flat(hard):
        return jnp.asarray(hard).reshape(B, -1).astype(jnp.int8)

    segs, offs, ntiles = [], [], []
    off = 0
    for m in active:
        d = _flat(m['dilate'].hard)
        s = _flat(m['std'].hard)
        n_l = _round_up(max(d.shape[1], s.shape[1]), tile_n)
        d = jnp.pad(d, ((0, b_pad - B), (0, n_l - d.shape[1])))
        s = jnp.pad(s, ((0, b_pad - B), (0, n_l - s.shape[1])))
        segs.append(jnp.stack([d, s]))              # (2, b_pad, n_l)
        offs.append(off)
        ntiles.append(n_l // tile_n)
        off += n_l // tile_n
    packed = jnp.concatenate(segs, axis=-1)         # (2, b_pad, N_total) int8
    k_max = max(ntiles)

    tile_off = jnp.asarray(offs, jnp.int32)         # scalar-prefetched
    n_tiles = jnp.asarray(ntiles, jnp.int32)        # scalar-prefetched
    fpp_dil = jnp.asarray(
        [float(m['dilate'].flops_per_position) for m in active], jnp.float32)
    fpp_std = jnp.asarray(
        [float(m['std'].flops_per_position) for m in active], jnp.float32)
    t = jnp.asarray(
        [float(m['dilate'].total_positions) / B * float(m['dilate'].flops_per_position)
         + float(m['std'].total_positions) / B * float(m['std'].flops_per_position)
         for m in active], jnp.float32)

    smem = pl.BlockSpec(memory_space=pltpu.MemorySpace.SMEM)
    grid_spec = pltpu.PrefetchScalarGridSpec(
        num_scalar_prefetch=2,
        grid=(L, k_max),
        in_specs=[
            smem,                                   # fpp_dil
            smem,                                   # fpp_std
            pl.BlockSpec(
                (2, b_pad, tile_n),
                lambda l, k, off_ref, nt_ref:
                    (0, 0, off_ref[l] + jnp.minimum(k, nt_ref[l] - 1))),
        ],
        out_specs=pl.BlockSpec((1, b_pad, 1),
                               lambda l, k, off_ref, nt_ref: (l, 0, 0)),
        scratch_shapes=[pltpu.VMEM((b_pad, 1), jnp.float32)],
    )

    c = pl.pallas_call(
        _spatial_loss_kernel,
        out_shape=jax.ShapeDtypeStruct((L, b_pad, 1), jnp.float32),
        grid_spec=grid_spec,
        compiler_params=pltpu.CompilerParams(
            dimension_semantics=("parallel", "arbitrary")),
    )(tile_off, n_tiles, fpp_dil, fpp_std, packed)

    # ---- tiny L x B epilogue in XLA -----------------------------------------
    c = c[:, :B, 0]                                 # (L, B) weighted counts
    perc = c / t[:, None]
    diff = perc - budgets[:, None]
    if unlimited_lower:
        up = jnp.maximum(diff, jnp.float32(0.0))
        pen = up * up * sample_weight[None, :]
    else:
        # relu(x)^2 + relu(-x)^2 == x^2 -> single fused penalty term (exact)
        pen = diff * diff * sample_weight[None, :]
    loss_mask = pen.mean(axis=1).sum() / num_masks  # PyTorch: /= len(masks)
    mask_percents = perc.mean(axis=1)
    return loss_mask, mask_percents


def _reference(masks, sparsity_target, sample_weight=None,
               unlimited_lower=False):
    """Pure-JAX mirror of SpatialLoss.forward (flops method)."""
    num_masks = len(masks)
    active = [m for m in masks if m['std'] is not None]
    B = int(active[0]['std'].hard.shape[0])
    if sample_weight is None:
        sample_weight = jnp.ones((B,), jnp.float32)
    else:
        sample_weight = jnp.asarray(sample_weight, jnp.float32)
    loss = jnp.zeros((), jnp.float32)
    percs = []
    w = float(sparsity_target)
    for m in active:
        md, ms = m['dilate'], m['std']
        c = (md.hard.astype(jnp.float32).reshape(B, -1).sum(1)
             * float(md.flops_per_position)
             + ms.hard.astype(jnp.float32).reshape(B, -1).sum(1)
             * float(ms.flops_per_position))
        t = (float(md.total_positions) / B * float(md.flops_per_position)
             + float(ms.total_positions) / B * float(ms.flops_per_position))
        perc = c / t
        percs.append(perc.mean())
        loss = loss + jnp.mean(jnp.maximum(perc - w, 0.0) ** 2 * sample_weight)
        if not unlimited_lower:
            loss = loss + jnp.mean(jnp.maximum(w - perc, 0.0) ** 2 * sample_weight)
    return loss / num_masks, jnp.stack(percs)


if __name__ == "__main__":
    key = jax.random.PRNGKey(0)
    B = 8
    sparsity_target = 0.5
    # (channels, H, W) per layer + (fpp_dil, fpp_std); spatial sizes differ so
    # the per-layer tile-count skip path is exercised.
    layer_cfg = [((2, 16, 16), (2.0, 1.0)),
                 ((1, 16, 16), (1.5, 1.0)),
                 ((1, 8, 8),   (3.0, 2.0)),
                 ((1, 8, 8),   (2.5, 1.5))]

    masks = []
    for (c, h, w), (fd, fs) in layer_cfg:
        key, k1, k2 = jax.random.split(key, 3)
        dil_hard = (jax.random.uniform(k1, (B, c, h, w)) < 0.6).astype(jnp.int8)
        std_hard = (jax.random.uniform(k2, (B, c, h, w)) < 0.4).astype(jnp.int8)
        total = float(B * c * h * w)
        masks.append({'dilate': MaskMeta(dil_hard, fd, total),
                      'std': MaskMeta(std_hard, fs, total)})
    # A layer whose std mask is None is skipped but still counts in /len(masks).
    masks.append({'dilate': MaskMeta(masks[0]['dilate'].hard, 1.0,
                                     float(B * 2 * 16 * 16)),
                  'std': None})

    key, kw = jax.random.split(key)
    sample_weight = jax.random.uniform(kw, (B,), jnp.float32) + 0.5

    loss, percs = spatial_loss(masks, sparsity_target,
                               sample_weight=sample_weight,
                               unlimited_lower=False, tile_n=128)
    jax.block_until_ready((loss, percs))

    ref_loss, ref_percs = _reference(masks, sparsity_target,
                                     sample_weight=sample_weight,
                                     unlimited_lower=False)
    assert jnp.allclose(loss, ref_loss, rtol=1e-5, atol=1e-6), (loss, ref_loss)
    assert jnp.allclose(percs, ref_percs, rtol=1e-5, atol=1e-6), (percs, ref_percs)
    assert 0.0 <= float(percs.min()) and float(percs.max()) <= 1.0

    print("KERNEL_OK")
</pallas_src>

<mosaic_0001>
module attributes {stable_mosaic.version = 11 : i64} {
  func.func @_spatial_loss_kernel(%arg0: i32, %arg1: i32, %arg2: memref<4xi32, #tpu.memory_space<smem>>, %arg3: memref<4xi32, #tpu.memory_space<smem>>, %arg4: memref<4xf32, #tpu.memory_space<smem>>, %arg5: memref<4xf32, #tpu.memory_space<smem>>, %arg6: memref<2x32x128xi8, #tpu.memory_space<vmem>>, %arg7: memref<1x32x1xf32, #tpu.memory_space<vmem>>, %arg8: memref<32x1xf32, #tpu.memory_space<vmem>>) attributes {dimension_semantics = [#tpu.dimension_semantics<parallel>, #tpu.dimension_semantics<arbitrary>], iteration_bounds = array<i64: 4, 4>, scalar_prefetch = 2 : i64, scratch_operands = 1 : i64, tpu.core_type = #tpu.core_type<tc>, window_params = [{transform_indices = @transform_0, window_bounds = array<i64: 4>}, {transform_indices = @transform_1, window_bounds = array<i64: 4>}, {transform_indices = @transform_2, window_bounds = array<i64: 2, 32, 128>}, {transform_indices = @transform_3, window_bounds = array<i64: 1, 32, 1>}]} {
    %c0_i32 = arith.constant 0 : i32
    %0 = arith.cmpi eq, %arg1, %c0_i32 : i32
    %1 = arith.extui %0 : i1 to i32
    %c0_i32_0 = arith.constant 0 : i32
    %2 = arith.cmpi ne, %1, %c0_i32_0 : i32
    scf.if %2 {
      %cst = arith.constant 0.000000e+00 : f32
      %11 = vector.broadcast %cst : f32 to vector<32x1xf32>
      %c0 = arith.constant 0 : index
      %c0_3 = arith.constant 0 : index
      %12 = vector.load %arg8[%c0, %c0_3] : memref<32x1xf32, #tpu.memory_space<vmem>>, vector<32x1xf32>
      tpu.vector_store %arg8[%c0, %c0_3], %11 {strides = array<i32>} : memref<32x1xf32, #tpu.memory_space<vmem>>, vector<32x1xf32>,
    } else {
    }
    %3 = arith.index_cast %arg0 : i32 to index
    %4 = memref.load %arg3[%3] : memref<4xi32, #tpu.memory_space<smem>>
    %5 = arith.cmpi slt, %arg1, %4 : i32
    %6 = arith.extui %5 : i1 to i32
    %c0_i32_1 = arith.constant 0 : i32
    %7 = arith.cmpi ne, %6, %c0_i32_1 : i32
    scf.if %7 {
      %c0 = arith.constant 0 : index
      %c0_3 = arith.constant 0 : index
      %c0_4 = arith.constant 0 : index
      %11 = vector.load %arg6[%c0, %c0_3, %c0_4] : memref<2x32x128xi8, #tpu.memory_space<vmem>>, vector<1x32x128xi8>
      %12 = vector.shape_cast %11 : vector<1x32x128xi8> to vector<32x128xi8>
      %13 = arith.sitofp %12 : vector<32x128xi8> to vector<32x128xf32>
      %c1 = arith.constant 1 : index
      %c0_5 = arith.constant 0 : index
      %c0_6 = arith.constant 0 : index
      %14 = vector.load %arg6[%c1, %c0_5, %c0_6] : memref<2x32x128xi8, #tpu.memory_space<vmem>>, vector<1x32x128xi8>
      %15 = vector.shape_cast %14 : vector<1x32x128xi8> to vector<32x128xi8>
      %16 = arith.sitofp %15 : vector<32x128xi8> to vector<32x128xf32>
      %c0_7 = arith.constant 0 : index
      %c0_8 = arith.constant 0 : index
      %17 = vector.load %arg8[%c0_7, %c0_8] : memref<32x1xf32, #tpu.memory_space<vmem>>, vector<32x1xf32>
      %18 = arith.index_cast %arg0 : i32 to index
      %19 = memref.load %arg4[%18] : memref<4xf32, #tpu.memory_space<smem>>
      %cst = arith.constant dense<0.000000e+00> : vector<32xf32>
      %20 = vector.multi_reduction <add>, %13, %cst [1] : vector<32x128xf32> to vector<32xf32>
      %21 = vector.shape_cast %20 : vector<32xf32> to vector<32x1xf32>
      %22 = vector.broadcast %19 : f32 to vector<32x1xf32>
      %23 = arith.mulf %22, %21 : vector<32x1xf32>
      %24 = arith.index_cast %arg0 : i32 to index
      %25 = memref.load %arg5[%24] : memref<4xf32, #tpu.memory_space<smem>>
      %cst_9 = arith.constant dense<0.000000e+00> : vector<32xf32>
      %26 = vector.multi_reduction <add>, %16, %cst_9 [1] : vector<32x128xf32> to vector<32xf32>
      %27 = vector.shape_cast %26 : vector<32xf32> to vector<32x1xf32>
      %28 = vector.broadcast %25 : f32 to vector<32x1xf32>
      %29 = arith.mulf %28, %27 : vector<32x1xf32>
      %30 = arith.addf %23, %29 : vector<32x1xf32>
      %31 = arith.addf %17, %30 : vector<32x1xf32>
      %c0_10 = arith.constant 0 : index
      %c0_11 = arith.constant 0 : index
      %32 = vector.load %arg8[%c0_10, %c0_11] : memref<32x1xf32, #tpu.memory_space<vmem>>, vector<32x1xf32>
      tpu.vector_store %arg8[%c0_10, %c0_11], %31 {strides = array<i32>} : memref<32x1xf32, #tpu.memory_space<vmem>>, vector<32x1xf32>,
    } else {
    }
    %c3_i32 = arith.constant 3 : i32
    %8 = arith.cmpi eq, %arg1, %c3_i32 : i32
    %9 = arith.extui %8 : i1 to i32
    %c0_i32_2 = arith.constant 0 : i32
    %10 = arith.cmpi ne, %9, %c0_i32_2 : i32
    scf.if %10 {
      %c0 = arith.constant 0 : index
      %c0_3 = arith.constant 0 : index
      %11 = vector.load %arg8[%c0, %c0_3] : memref<32x1xf32, #tpu.memory_space<vmem>>, vector<32x1xf32>
      %c0_4 = arith.constant 0 : index
      %c0_5 = arith.constant 0 : index
      %c0_6 = arith.constant 0 : index
      %12 = vector.load %arg7[%c0_4, %c0_5, %c0_6] : memref<1x32x1xf32, #tpu.memory_space<vmem>>, vector<1x32x1xf32>
      %13 = vector.shape_cast %12 : vector<1x32x1xf32> to vector<32x1xf32>
      %14 = vector.shape_cast %11 : vector<32x1xf32> to vector<1x32x1xf32>
      tpu.vector_store %arg7[%c0_4, %c0_5, %c0_6], %14 {strides = array<i32>} : memref<1x32x1xf32, #tpu.memory_space<vmem>>, vector<1x32x1xf32>,
    } else {
    }
    return
  }
  func.func @transform_0(%arg0: i32, %arg1: i32, %arg2: memref<4xi32, #tpu.memory_space<smem>>, %arg3: memref<4xi32, #tpu.memory_space<smem>>) -> i32 {
    %c0_i32 = arith.constant 0 : i32
    %c0_i32_0 = arith.constant 0 : i32
    return %c0_i32 : i32
  }
  func.func @transform_1(%arg0: i32, %arg1: i32, %arg2: memref<4xi32, #tpu.memory_space<smem>>, %arg3: memref<4xi32, #tpu.memory_space<smem>>) -> i32 {
    %c0_i32 = arith.constant 0 : i32
    %c0_i32_0 = arith.constant 0 : i32
    return %c0_i32 : i32
  }
  func.func @transform_2(%arg0: i32, %arg1: i32, %arg2: memref<4xi32, #tpu.memory_space<smem>>, %arg3: memref<4xi32, #tpu.memory_space<smem>>) -> (i32, i32, i32) {
    %0 = arith.index_cast %arg0 : i32 to index
    %1 = memref.load %arg2[%0] : memref<4xi32, #tpu.memory_space<smem>>
    %2 = arith.index_cast %arg0 : i32 to index
    %3 = memref.load %arg3[%2] : memref<4xi32, #tpu.memory_space<smem>>
    %c1_i32 = arith.constant 1 : i32
    %4 = arith.subi %3, %c1_i32 : i32
    %5 = arith.minsi %arg1, %4 : i32
    %6 = arith.addi %1, %5 : i32
    %c0_i32 = arith.constant 0 : i32
    %c0_i32_0 = arith.constant 0 : i32
    %c0_i32_1 = arith.constant 0 : i32
    return %c0_i32, %c0_i32_0, %6 : i32, i32, i32
  }
  func.func @transform_3(%arg0: i32, %arg1: i32, %arg2: memref<4xi32, #tpu.memory_space<smem>>, %arg3: memref<4xi32, #tpu.memory_space<smem>>) -> (i32, i32, i32) {
    %c0_i32 = arith.constant 0 : i32
    %c0_i32_0 = arith.constant 0 : i32
    %c0_i32_1 = arith.constant 0 : i32
    return %arg0, %c0_i32, %c0_i32_0 : i32, i32, i32
  }
}

</mosaic_0001>

<llo_original>
// kernel: tpu_custom_call.1
$region0: #{tpu_custom_call.1}
  #allocation0 [shape = 'u32[]', space=smem, size = 0x4, offset = 0x4, fixed_abs, tag = 'smem constant byte address 0x4 - core index']
  #allocation1 [shape = 'u32[72,128]{1,0:T(1,128)}', space=vmem, size = 0x9000, scoped, tag = 'internal scratch']
  #allocation2 [shape = 'f32[32,1]{1,0:T(8,128)}', space=vmem, size = 0x4000, scoped, tag = 'scratch operand']
  #allocation3 [shape = 's32[1]{0}', space=sflag, size = 0x4, scoped, tag = 'scoped memory for tpu_custom_call.1']
  #allocation4 [shape = 'u8[512]{0}', space=smem, size = 0x200, scoped, tag = 'prefetched SMEM operand 0']
  #allocation5 [shape = 'u8[512]{0}', space=smem, size = 0x200, scoped, tag = 'prefetched SMEM operand 1']
  %s0 = inlined_call_operand.hbm [shape: s32[4], index: 0, kind: input, shape index: {}]
  %s1 = inlined_call_operand.hbm [shape: s32[4], index: 1, kind: input, shape index: {}]
  %s2 = inlined_call_operand.vmem [shape: f32[4], index: 2, kind: input, shape index: {}]
  %s3 = inlined_call_operand.vmem [shape: f32[4], index: 3, kind: input, shape index: {}]
  %s4 = inlined_call_operand.hbm [shape: s8[2,32,1024], index: 4, kind: input, shape index: {}]
  %s5 = inlined_call_operand.vmem [shape: f32[4,32,1], index: 5, kind: output, shape index: {}]
  %s6 = sld [smem:[#allocation0]]
  $region69: #{tpu_custom_call.1} parent=0
    _
  %s8 = ssub.s32 1, %s6
  %s9 = scalar_select 0, %s8, %s6
  %s11 = sshll.u32 %s0, 4
  %s12 = int_to_ptr.hbm [resolvable:$true] %s11
  %14 = dma.hbm_to_smem %s12, 16, [#allocation4], [#allocation3]
  %s16 = sshll.u32 %s1, 4
  %s17 = int_to_ptr.hbm [resolvable:$true] %s16
  %19 = dma.hbm_to_smem %s17, 16, [#allocation5], [#allocation3]
  %21 = dma.done [#allocation3], 32
  %22 = sfence
  $region1: #{tpu_custom_call.1} parent=0
    #allocation6 [shape = 'u8[512]{0}', space=smem, size = 0x200, scoped, tag = 'input window, operand 2, single buffered']
    #allocation7 [shape = 's32[2]{0}', space=sflag, size = 0x8, scoped, tag = 'scoped memory for tpu_custom_call.1']
    #allocation8 [shape = 's32[2]{0}', space=sflag, size = 0x8, scoped, tag = 'scoped memory for tpu_custom_call.1']
    #allocation9 [shape = 'u8[512]{0}', space=smem, size = 0x200, scoped, tag = 'input window, operand 3, single buffered']
    #allocation10 [shape = 's32[1]{0}', space=sflag, size = 0x4, scoped, tag = 'scoped memory for tpu_custom_call.1']
    #allocation11 [shape = 'u8[16384]{0}', space=vmem, size = 0x4000, scoped, tag = 'input window, operand 4']
    %23 = vsyncpa [#allocation8], 0
    %24 = vsyncpa [#allocation10], 0
    %25 = vsyncpa [#allocation7], 0
    %s26 = scalar_lea.sflag [#allocation7], 1
    %27 = vsyncpa %s26, 0
    loop: start=0, step=1, limit=18
    $region2: #{tpu_custom_call.1} parent=1 // loop_pre_header
      _
    $region3: #{tpu_custom_call.1} parent=1 // loop_header
      %s29 = sphi 0, %s33
      %p30 = scmp.ge.s32.totalorder %s29, 18
      %s36 = sphi 0, %s48
      %s37 = sphi 0, %s44
      %s38 = sphi 0, %s36
      %s39 = sphi 0, %s37
      %s40 = sphi 0, %s38
      %s41 = sphi 0, %s39
      %s49 = sphi 0, %s49
      %s51 = sphi 0, %s49
      %s52 = sphi 0, %s51
      %s66 = sphi 0, %s52
      %s70 = sphi 0, %s70
      %s72 = sphi 0, %s70
      %s73 = sphi 0, %s72
      %s87 = sphi 0, %s73
      %s105 = sphi 0, %s107
      %s108 = sphi 0, %s105
      %s109 = sphi 0, %s108
      %s125 = sphi 0, %s109
      %s131 = sphi 0, %s133
      %s134 = sphi 0, %s131
      %s135 = sphi 0, %s134
      %s151 = sphi 0, %s135
    $region4: #{tpu_custom_call.1} parent=1 // loop_header_branch
      %32 = sbr.rel (%p30) target = $region8
    $region5: #{tpu_custom_call.1} parent=1 // loop_body
      %s34 = ssub.s32 %s29, 1
      %s35 = ssub.s32 %s29, 2
      %s42 = sadd.s32 1, %s37
      %p43 = scmp.ge.s32.totalorder %s42, 4
      %s44 = scalar_select %p43, 0, %s42
      %s45 = sadd.s32 1, %s36
      %s46 = scalar_select %p43, %s45, %s36
      %p47 = scmp.ge.s32.totalorder %s46, 4
      %s48 = scalar_select %p47, 0, %s46
      %s50 = sadd.s32 %s49, 1
      %p53 = scmp.eq.s32.totalorder %s29, 15
      %p54 = scmp.ne.s32.totalorder %s49, %s51
      %p55 = scmp.eq.s32.totalorder %s29, 0
      %p56 = por %p54, %p55
      %p57 = scmp.ne.s32.totalorder %s49, %s51
      %p58 = scmp.eq.s32.totalorder %s34, 15
      %p59 = por %p57, %p58
      %p60 = scmp.ne.s32.totalorder %s51, %s52
      %p61 = scmp.eq.s32.totalorder %s34, 0
      %p62 = por %p60, %p61
      %p63 = scmp.ne.s32.totalorder %s51, %s52
      %p64 = scmp.eq.s32.totalorder %s35, 15
      %p65 = por %p63, %p64
      %p67 = scmp.ne.s32.totalorder %s52, %s66
      %p68 = scmp.eq.s32.totalorder %s35, 0
      %p69 = por %p67, %p68
      %s71 = sadd.s32 %s70, 1
      %p74 = scmp.eq.s32.totalorder %s29, 15
      %p75 = scmp.ne.s32.totalorder %s70, %s72
      %p76 = scmp.eq.s32.totalorder %s29, 0
      %p77 = por %p75, %p76
      %p78 = scmp.ne.s32.totalorder %s70, %s72
      %p79 = scmp.eq.s32.totalorder %s34, 15
      %p80 = por %p78, %p79
      %p81 = scmp.ne.s32.totalorder %s72, %s73
      %p82 = scmp.eq.s32.totalorder %s34, 0
      %p83 = por %p81, %p82
      %p84 = scmp.ne.s32.totalorder %s72, %s73
      %p85 = scmp.eq.s32.totalorder %s35, 15
      %p86 = por %p84, %p85
      %p88 = scmp.ne.s32.totalorder %s73, %s87
      %p89 = scmp.eq.s32.totalorder %s35, 0
      %p90 = por %p88, %p89
      %s91 = sld [smem:[#allocation4 + %s36]]
      %s92 = sld [smem:[#allocation5 + %s36]]
      %s93 = ssub.s32 %s92, 1
      %p94 = scmp.lt.s32.totalorder %s37, %s93
      %s95 = scalar_select %p94, %s37, %s93
      %s96 = sadd.s32 %s91, %s95
      %s97 = sld [smem:[#allocation4 + %s48]]
      %s98 = sld [smem:[#allocation5 + %s48]]
      %s99 = ssub.s32 %s98, 1
      %p100 = scmp.lt.s32.totalorder %s44, %s99
      %s101 = scalar_select %p100, %s44, %s99
      %s102 = sadd.s32 %s97, %s101
      %s103 = ssub.s32 %s96, %s102
      %p104 = scmp.eq.s32.totalorder %s103, 0
      %s106 = sadd.s32 %s105, 1
      %s107 = scalar_select %p104, %s105, %s106
      %p110 = pneg %p104
      %p111 = scmp.eq.s32.totalorder %s29, 15
      %p112 = por %p110, %p111
      %p113 = scmp.ne.s32.totalorder %s105, %s108
      %p114 = scmp.eq.s32.totalorder %s29, 0
      %p115 = por %p113, %p114
      %p116 = scmp.ne.s32.totalorder %s105, %s108
      %p117 = scmp.eq.s32.totalorder %s34, 15
      %p118 = por %p116, %p117
      %p119 = scmp.ne.s32.totalorder %s108, %s109
      %p120 = scmp.eq.s32.totalorder %s34, 0
      %p121 = por %p119, %p120
      %p122 = scmp.ne.s32.totalorder %s108, %s109
      %p123 = scmp.eq.s32.totalorder %s35, 15
      %p124 = por %p122, %p123
      %p126 = scmp.ne.s32.totalorder %s109, %s125
      %p127 = scmp.eq.s32.totalorder %s35, 0
      %p128 = por %p126, %p127
      %s129 = ssub.s32 %s36, %s48
      %p130 = scmp.eq.s32.totalorder %s129, 0
      %s132 = sadd.s32 %s131, 1
      %s133 = scalar_select %p130, %s131, %s132
      %p136 = pneg %p130
      %p137 = scmp.eq.s32.totalorder %s29, 15
      %p138 = por %p136, %p137
      %p139 = scmp.ne.s32.totalorder %s131, %s134
      %p140 = scmp.eq.s32.totalorder %s29, 0
      %p141 = por %p139, %p140
      %p142 = scmp.ne.s32.totalorder %s131, %s134
      %p143 = scmp.eq.s32.totalorder %s34, 15
      %p144 = por %p142, %p143
      %p145 = scmp.ne.s32.totalorder %s134, %s135
      %p146 = scmp.eq.s32.totalorder %s34, 0
      %p147 = por %p145, %p146
      %p148 = scmp.ne.s32.totalorder %s134, %s135
      %p149 = scmp.eq.s32.totalorder %s35, 15
      %p150 = por %p148, %p149
      %p152 = scmp.ne.s32.totalorder %s135, %s151
      %p153 = scmp.eq.s32.totalorder %s35, 0
      %p154 = por %p152, %p153
      %p155 = scmp.le.s32.totalorder 1, %s29
      %p156 = scmp.lt.s32.totalorder %s29, 17
      %p157 = pnand %p155, %p156
      %p158 = pneg %p157
      // Predicated region
      $region9: #{tpu_custom_call.1} parent=5 // pred_check
        _
      $region10: #{tpu_custom_call.1} parent=5 // pred_check_branch
        %160 = sbr.rel (%p157) target = $region12
      $region11: #{tpu_custom_call.1} parent=5 // pred_region
        %s161 = ssub.s32 %s29, 1
        // Predicated region
        $region13: #{tpu_custom_call.1} parent=11 // pred_check
          %p162 = pneg %p62
        $region14: #{tpu_custom_call.1} parent=11 // pred_check_branch
          %164 = sbr.rel (%p162) target = $region16
        $region15: #{tpu_custom_call.1} parent=11 // pred_region
          %166 = vsyncadd [#allocation8], 0
          %s168 = sshll.u32 %s2, 4
          %s169 = int_to_ptr.vmem [resolvable:$true] %s168
          %171 = dma.vmem_to_smem %s169, 16, [#allocation6], [#allocation8]
        $region16: #{tpu_custom_call.1} parent=11 // pred_fallthru
          _
        // Predicated region
        $region17: #{tpu_custom_call.1} parent=11 // pred_check
          %p172 = pneg %p83
        $region18: #{tpu_custom_call.1} parent=11 // pred_check_branch
          %174 = sbr.rel (%p172) target = $region20
        $region19: #{tpu_custom_call.1} parent=11 // pred_region
          %176 = vsyncadd [#allocation10], 0
          %s178 = sshll.u32 %s3, 4
          %s179 = int_to_ptr.vmem [resolvable:$true] %s178
          %181 = dma.vmem_to_smem %s179, 16, [#allocation9], [#allocation10]
        $region20: #{tpu_custom_call.1} parent=11 // pred_fallthru
          _
      $region12: #{tpu_custom_call.1} parent=5 // pred_fallthru
        _
      %p182 = scmp.lt.s32.totalorder %s29, 16
      // Predicated region
      $region21: #{tpu_custom_call.1} parent=5 // pred_check
        %p183 = pneg %p182
      $region22: #{tpu_custom_call.1} parent=5 // pred_check_branch
        %185 = sbr.rel (%p183) target = $region24
      $region23: #{tpu_custom_call.1} parent=5 // pred_region
        // Predicated region
        $region25: #{tpu_custom_call.1} parent=23 // pred_check
          %p186 = pneg %p115
        $region26: #{tpu_custom_call.1} parent=23 // pred_check_branch
          %188 = sbr.rel (%p186) target = $region28
        $region27: #{tpu_custom_call.1} parent=23 // pred_region
          %s189 = sand.u32 %s105, 1
          %s190 = scalar_lea.sflag [#allocation7], %s189
          %s191 = sand.u32 %s105, 1
          %s192 = smul.addr %s191, 16
          %s193 = scalar_lea.vmem [#allocation11], %s192
          %s194 = sld [smem:[#allocation4 + %s36]]
          %s195 = sld [smem:[#allocation5 + %s36]]
          %s196 = ssub.s32 %s195, 1
          %p197 = scmp.lt.s32.totalorder %s37, %s196
          %s198 = scalar_select %p197, %s37, %s196
          %s199 = sadd.s32 %s194, %s198
          %201 = vsyncadd %s190, 0
          %s202 = smul.addr %s199, 8
          %s203 = scalar_lea.hbm %s4, %s202
          %s204 = sshll.u32 %s203, 4
          %s205 = int_to_ptr.hbm [resolvable:$true] %s204
          %s206 = sshll.u32 %s193, 4
          %s207 = int_to_ptr.vmem [resolvable:$true] %s206
          %212 = dma.hbm_to_vmem [thread:$0]  %s205, 256, %s207, %s190, 1024, 128, 8
        $region28: #{tpu_custom_call.1} parent=23 // pred_fallthru
          _
      $region24: #{tpu_custom_call.1} parent=5 // pred_fallthru
        _
      %p213 = scmp.le.s32.totalorder 1, %s29
      %p214 = scmp.lt.s32.totalorder %s29, 17
      %p215 = pnand %p213, %p214
      %p216 = pneg %p215
      // Predicated region
      $region29: #{tpu_custom_call.1} parent=5 // pred_check
        _
      $region30: #{tpu_custom_call.1} parent=5 // pred_check_branch
        %218 = sbr.rel (%p215) target = $region32
      $region31: #{tpu_custom_call.1} parent=5 // pred_region
        %s219 = ssub.s32 %s29, 1
        // Predicated region
        $region33: #{tpu_custom_call.1} parent=31 // pred_check
          %p220 = pneg %p62
        $region34: #{tpu_custom_call.1} parent=31 // pred_check_branch
          %222 = sbr.rel (%p220) target = $region36
        $region35: #{tpu_custom_call.1} parent=31 // pred_region
          %224 = dma.done [#allocation8], 16
        $region36: #{tpu_custom_call.1} parent=31 // pred_fallthru
          _
        // Predicated region
        $region37: #{tpu_custom_call.1} parent=31 // pred_check
          %p225 = pneg %p83
        $region38: #{tpu_custom_call.1} parent=31 // pred_check_branch
          %227 = sbr.rel (%p225) target = $region40
        $region39: #{tpu_custom_call.1} parent=31 // pred_region
          %229 = dma.done [#allocation10], 16
        $region40: #{tpu_custom_call.1} parent=31 // pred_fallthru
          _
        %s230 = sand.u32 %s108, 1
        %s231 = scalar_lea.sflag [#allocation7], %s230
        %s232 = sand.u32 %s108, 1
        %s233 = smul.addr %s232, 16
        %s234 = scalar_lea.vmem [#allocation11], %s233
        // Predicated region
        $region41: #{tpu_custom_call.1} parent=31 // pred_check
          %p235 = pneg %p121
        $region42: #{tpu_custom_call.1} parent=31 // pred_check_branch
          %237 = sbr.rel (%p235) target = $region44
        $region43: #{tpu_custom_call.1} parent=31 // pred_region
          %239 = dma.done %s231, 256
        $region44: #{tpu_custom_call.1} parent=31 // pred_fallthru
          _
        %240 = sfence
        %p241 = pneg %p62
        %p242 = pneg %p59
        %p243 = pneg %p83
        %p244 = pneg %p80
        %s245 = sand.u32 %s108, 1
        %s246 = scalar_lea.sflag [#allocation7], %s245
        %s247 = sand.u32 %s108, 1
        %s248 = smul.addr %s247, 16
        %s249 = scalar_lea.vmem [#allocation11], %s248
        %p250 = pneg %p121
        %p251 = pneg %p118
        %p252 = pneg %p147
        %p253 = pneg %p144
        %p254 = scmp.lt.s32.totalorder %s38, 3
        %s255 = scalar_select %p254, %s38, 3
        %s256 = smul.addr %s255, 4
        %s257 = smul.addr %s256, 8
        %s258 = scalar_lea.vmem %s5, %s257
        %s259 = sld [smem:[#allocation4 + %s38]]
        %s260 = sld [smem:[#allocation5 + %s38]]
        %s261 = ssub.s32 %s260, 1
        %p262 = scmp.lt.s32.totalorder %s39, %s261
        %s263 = scalar_select %p262, %s39, %s261
        %s264 = sadd.s32 %s259, %s263
        %p265 = scmp.lt.s32.totalorder %s38, 3
        %s266 = scalar_select %p265, %s38, 3
        %s267 = smul.addr %s266, 4
        %s268 = smul.addr %s267, 8
        %s269 = scalar_lea.vmem %s5, %s268
        %p270 = scmp.eq.s32.totalorder %s39, 0
        // Predicated region
        $region45: #{tpu_custom_call.1} parent=31 // pred_check
          %p271 = pneg %p270
        $region46: #{tpu_custom_call.1} parent=31 // pred_check_branch
          %273 = sbr.rel (%p271) target = $region48
        $region47: #{tpu_custom_call.1} parent=31 // pred_region
          %vm274 = vcmask 7168
          %275 = vst.msk [vmem:[#allocation2] sm:$0xff] %vm274, 0.0
          %276 = vst.msk [vmem:[#allocation2 + $0x8] sm:$0xff] %vm274, 0.0
          %277 = vst.msk [vmem:[#allocation2 + $0x10] sm:$0xff] %vm274, 0.0
          %278 = vst.msk [vmem:[#allocation2 + $0x18] sm:$0xff] %vm274, 0.0
        $region48: #{tpu_custom_call.1} parent=31 // pred_fallthru
          _
        %s279 = sld [smem:[#allocation5 + %s38]]
        %p280 = scmp.lt.s32.totalorder %s39, %s279
        // Predicated region
        $region49: #{tpu_custom_call.1} parent=31 // pred_check
          %p281 = pneg %p280
        $region50: #{tpu_custom_call.1} parent=31 // pred_check_branch
          %283 = sbr.rel (%p281) target = $region52
        $region51: #{tpu_custom_call.1} parent=31 // pred_region
          %v284 = vld [vmem:[%s234] sm:$0xff]
          %v285 = vunpack.c.0.s8 %v284
          %v286 = vunpack.c.1.s8 %v284
          %v287 = vunpack.c.2.s8 %v284
          %v288 = vunpack.c.3.s8 %v284
          %v289 = vcvt.s32.f32 %v285
          %v290 = vcvt.s32.f32 %v286
          %v291 = vcvt.s32.f32 %v287
          %v292 = vcvt.s32.f32 %v288
          %s293 = scalar_lea.vmem %s234, 8 [#allocation11]
          %v294 = vld [vmem:[%s293] sm:$0xff]
          %v295 = vunpack.c.0.s8 %v294
          %v296 = vunpack.c.1.s8 %v294
          %v297 = vunpack.c.2.s8 %v294
          %v298 = vunpack.c.3.s8 %v294
          %v299 = vcvt.s32.f32 %v295
          %v300 = vcvt.s32.f32 %v296
          %v301 = vcvt.s32.f32 %v297
          %v302 = vcvt.s32.f32 %v298
          %v303 = vld [vmem:[#allocation2] sm:$0xff]
          %v304 = vld [vmem:[#allocation2 + $0x8] sm:$0xff]
          %v305 = vld [vmem:[#allocation2 + $0x10] sm:$0xff]
          %v306 = vld [vmem:[#allocation2 + $0x18] sm:$0xff]
          %s307 = sld [smem:[#allocation6 + %s38]]
          %308 = vadd.xlane.f32.xlu0 %v289
          %v309 = vpop.xlane.xlu0 %308
          %310 = vadd.xlane.f32.xlu0 %v290
          %v311 = vpop.xlane.xlu0 %310
          %312 = vadd.xlane.f32.xlu0 %v291
          %v313 = vpop.xlane.xlu0 %312
          %314 = vadd.xlane.f32.xlu0 %v292
          %v315 = vpop.xlane.xlu0 %314
          %v316 = vstv %s307
          %v317 = vmul.f32 %v316, %v309
          %v318 = vmul.f32 %v316, %v311
          %v319 = vmul.f32 %v316, %v313
          %v320 = vmul.f32 %v316, %v315
          %s321 = sld [smem:[#allocation9 + %s38]]
          %322 = vadd.xlane.f32.xlu0 %v299
          %v323 = vpop.xlane.xlu0 %322
          %324 = vadd.xlane.f32.xlu0 %v300
          %v325 = vpop.xlane.xlu0 %324
          %326 = vadd.xlane.f32.xlu0 %v301
          %v327 = vpop.xlane.xlu0 %326
          %328 = vadd.xlane.f32.xlu0 %v302
          %v329 = vpop.xlane.xlu0 %328
          %v330 = vstv %s321
          %v331 = vmul.f32 %v330, %v323
          %v332 = vmul.f32 %v330, %v325
          %v333 = vmul.f32 %v330, %v327
          %v334 = vmul.f32 %v330, %v329
          %v335 = vadd.f32 %v317, %v331
          %v336 = vadd.f32 %v318, %v332
          %v337 = vadd.f32 %v319, %v333
          %v338 = vadd.f32 %v320, %v334
          %v339 = vadd.f32 %v303, %v335
          %v340 = vadd.f32 %v304, %v336
          %v341 = vadd.f32 %v305, %v337
          %v342 = vadd.f32 %v306, %v338
          %vm343 = vcmask 7168
          %344 = vst.msk [vmem:[#allocation2] sm:$0xff] %vm343, %v339
          %345 = vst.msk [vmem:[#allocation2 + $0x8] sm:$0xff] %vm343, %v340
          %346 = vst.msk [vmem:[#allocation2 + $0x10] sm:$0xff] %vm343, %v341
          %347 = vst.msk [vmem:[#allocation2 + $0x18] sm:$0xff] %vm343, %v342
        $region52: #{tpu_custom_call.1} parent=31 // pred_fallthru
          _
        %p348 = scmp.eq.s32.totalorder %s39, 3
        // Predicated region
        $region53: #{tpu_custom_call.1} parent=31 // pred_check
          %p349 = pneg %p348
        $region54: #{tpu_custom_call.1} parent=31 // pred_check_branch
          %351 = sbr.rel (%p349) target = $region56
        $region55: #{tpu_custom_call.1} parent=31 // pred_region
          %v352 = vld [vmem:[#allocation2] sm:$0xff]
          %v353 = vld [vmem:[#allocation2 + $0x8] sm:$0xff]
          %v354 = vld [vmem:[#allocation2 + $0x10] sm:$0xff]
          %v355 = vld [vmem:[#allocation2 + $0x18] sm:$0xff]
          %vm356 = vcmask 7168
          %357 = vst.msk [vmem:[%s269] sm:$0xff] %vm356, %v352
          %358 = vst.msk [vmem:[%s269 + $0x8] sm:$0xff] %vm356, %v353
          %359 = vst.msk [vmem:[%s269 + $0x10] sm:$0xff] %vm356, %v354
          %360 = vst.msk [vmem:[%s269 + $0x18] sm:$0xff] %vm356, %v355
        $region56: #{tpu_custom_call.1} parent=31 // pred_fallthru
          _
        %p361 = scmp.lt.s32.totalorder %s38, 3
        %s362 = scalar_select %p361, %s38, 3
        %s363 = smul.addr %s362, 4
        %s364 = smul.addr %s363, 8
        %s365 = scalar_lea.vmem %s5, %s364
        // Predicated region
        $region57: #{tpu_custom_call.1} parent=31 // pred_check
          %p366 = pneg %p144
        $region58: #{tpu_custom_call.1} parent=31 // pred_check_branch
          %368 = sbr.rel (%p366) target = $region60
        $region59: #{tpu_custom_call.1} parent=31 // pred_region
          _
        $region60: #{tpu_custom_call.1} parent=31 // pred_fallthru
          _
      $region32: #{tpu_custom_call.1} parent=5 // pred_fallthru
        _
      %p369 = scmp.le.s32.totalorder 2, %s29
      // Predicated region
      $region61: #{tpu_custom_call.1} parent=5 // pred_check
        %p370 = pneg %p369
      $region62: #{tpu_custom_call.1} parent=5 // pred_check_branch
        %372 = sbr.rel (%p370) target = $region64
      $region63: #{tpu_custom_call.1} parent=5 // pred_region
        %s373 = ssub.s32 %s29, 2
        // Predicated region
        $region65: #{tpu_custom_call.1} parent=63 // pred_check
          %p374 = pneg %p150
        $region66: #{tpu_custom_call.1} parent=63 // pred_check_branch
          %376 = sbr.rel (%p374) target = $region68
        $region67: #{tpu_custom_call.1} parent=63 // pred_region
          %p377 = scmp.lt.s32.totalorder %s40, 3
          %s378 = scalar_select %p377, %s40, 3
          %s379 = smul.addr %s378, 4
          %s380 = smul.addr %s379, 8
          %s381 = scalar_lea.vmem %s5, %s380
        $region68: #{tpu_custom_call.1} parent=63 // pred_fallthru
          _
      $region64: #{tpu_custom_call.1} parent=5 // pred_fallthru
        _
    $region6: #{tpu_custom_call.1} parent=1 // loop_footer
      %s33 = sadd.s32 1, %s29
    $region7: #{tpu_custom_call.1} parent=1 // loop_footer_branch
      %28 = sbr.rel target = $region3
    $region8: #{tpu_custom_call.1} parent=1 // loop_exit
      _
    %382 = vsyncpa [#allocation7], 1
    %s383 = scalar_lea.sflag [#allocation7], 1
    %384 = vsyncpa %s383, 1
    %385 = vsyncpa [#allocation8], 1
    %s386 = scalar_lea.sflag [#allocation8], 1
    %387 = vsyncpa %s386, 1
    %388 = vsyncpa [#allocation10], 1

</llo_original>
